<compile_context>
chip_gen: v6e
topology: v6e:2x2x1
jax: 0.10.0
libtpu: 0.0.40
codegen_flags: <defaults>
</compile_context>

<pallas_src>
import functools

import jax
import jax.numpy as jnp
from jax import lax
from jax.experimental import pallas as pl
from jax.experimental.pallas import tpu as pltpu

HIDDEN = 128
OUT = 1


def _cdiv(a, b):
    return (a + b - 1) // b


def _round_up(a, m):
    return ((a + m - 1) // m) * m


def _vmem_budgets():
    """(tile budget, requested scoped-VMEM limit), generation aware.

    v7x has 64 MiB physical VMEM per TensorCore, v5e/v6e have 128 MiB."""
    try:
        phys = pltpu.get_tpu_info().vmem_capacity_bytes
    except Exception:
        phys = 64 * 1024 * 1024            # unknown -> assume the tight (v7x) case
    if phys >= 96 * 1024 * 1024:           # v5e / v6e
        return 48 * 1024 * 1024, 96 * 1024 * 1024
    return 24 * 1024 * 1024, 48 * 1024 * 1024   # v7x


def _choose_tiles(B, D, budget):
    # K (input-feature) tile: whole D when small, else 512-wide slabs streamed
    # over an 'arbitrary' grid axis into an f32 accumulator.
    tk = D if D <= 512 else 512
    dk = _round_up(tk, 128)                # lane-padded x-tile width in VMEM

    # Batch tile sized by BYTES of the x tile (~4 MiB of HBM per tile so we
    # are not per-grid-step-overhead bound), rounded to a multiple of 128 so
    # the (1, TB) output row stays lane-dense / unmasked.
    target_x_bytes = 4 * 1024 * 1024
    tb = _round_up(max(128, target_x_bytes // max(1, 4 * tk)), 128)
    tb = min(tb, _round_up(B, 128))
    # Keep >= 2 steps on the parallel batch axis when possible (v7x megacore).
    if B >= 256:
        tb = min(tb, _round_up(_cdiv(B, 2), 128))

    # VMEM cap, counting lane padding: double-buffered f32 x tile + in-kernel
    # bf16 cast, f32 accumulator, fc1 activations (f32 + bf16 copies), and the
    # sublane-padded (1, TB) f32 output rows.
    per_row = 2 * dk * 4 + dk * 2 + HIDDEN * 4 + HIDDEN * 6 + 2 * 8 * 4
    fixed = 2 * _round_up(tk, 16) * HIDDEN * 2 + (2 << 20)   # w1 blocks + headroom
    tb_cap = max(128, ((budget - fixed) // per_row) // 128 * 128)
    tb = max(128, min(tb, tb_cap))
    return tb, tk


def ann_kernel(x_ref, w1_ref, b1_ref, w2t_ref, b2_ref, o_ref, acc_ref,
               *, d_total, k_tile, mask_k):
    k = pl.program_id(1)

    @pl.when(k == 0)
    def _():
        acc_ref[...] = jnp.zeros_like(acc_ref)

    xb = x_ref[...]
    w1b = w1_ref[...]
    if mask_k:
        # Ragged K tail: zero the invalid columns of x AND the invalid rows of
        # w1 so stale VMEM (possibly NaN) cannot pollute valid accumulations.
        rem = d_total - k * k_tile
        col = lax.broadcasted_iota(jnp.int32, xb.shape, 1)
        xb = jnp.where(col < rem, xb, jnp.zeros_like(xb))
        row = lax.broadcasted_iota(jnp.int32, w1b.shape, 0)
        w1b = jnp.where(row < rem, w1b, jnp.zeros_like(w1b))

    # fc1 on the MXU: bf16 x bf16 -> f32 accumulate (cast happens in-kernel so
    # x is only read once from HBM, as f32).
    acc_ref[...] += jnp.dot(xb.astype(jnp.bfloat16), w1b,
                            preferred_element_type=jnp.float32)

    @pl.when(k == pl.num_programs(1) - 1)
    def _():
        h = jnp.maximum(acc_ref[...] + b1_ref[...], 0.0)          # bias + ReLU
        h = h.astype(jnp.bfloat16)
        # fc2 lane-dense: contract (1, HIDDEN) with (TB, HIDDEN) over HIDDEN
        # -> (1, TB) so the epilogue + store run at full lane width.
        z = lax.dot_general(
            w2t_ref[...], h,
            dimension_numbers=(((1,), (1,)), ((), ())),
            preferred_element_type=jnp.float32,
        )
        z = z + b2_ref[0]                                         # scalar bias (SMEM)
        # sigmoid: exp + approx reciprocal both routed to the EUP.
        o_ref[...] = pl.reciprocal(1.0 + jnp.exp(-z), approx=True)


@jax.jit
def ann_forward(x, w1, b1, w2, b2):
    B, D = x.shape
    budget, vmem_limit = _vmem_budgets()
    tb, tk = _choose_tiles(B, D, budget)
    n_b = _cdiv(B, tb)
    n_k = _cdiv(D, tk)
    mask_k = (n_k > 1) and (D % tk != 0)

    # Weights are tiny -> cheap wrapper casts; x is passed through untouched.
    w1_bf = w1.reshape(D, HIDDEN).astype(jnp.bfloat16)
    b1_2d = b1.reshape(1, HIDDEN).astype(jnp.float32)
    w2t_bf = w2.reshape(HIDDEN, OUT).T.astype(jnp.bfloat16)   # (1, 128)
    b2_s = b2.reshape(OUT).astype(jnp.float32)                # (1,) scalar in SMEM

    kernel = functools.partial(ann_kernel, d_total=D, k_tile=tk, mask_k=mask_k)

    # TODO(synk): on v5e, if the x DMA is still exposed, add
    # pipeline_mode=pl.Buffered(3) on the x BlockSpec (needs chip-type probe).
    out_row = pl.pallas_call(
        kernel,
        out_shape=jax.ShapeDtypeStruct((1, B), jnp.float32),
        grid_spec=pltpu.PrefetchScalarGridSpec(
            num_scalar_prefetch=0,
            grid=(n_b, n_k),
            in_specs=[
                pl.BlockSpec((tb, tk), lambda i, k: (i, k)),          # x tile (f32)
                pl.BlockSpec((tk, HIDDEN), lambda i, k: (k, 0)),      # w1 (bf16)
                pl.BlockSpec((1, HIDDEN), lambda i, k: (0, 0)),       # b1
                pl.BlockSpec((OUT, HIDDEN), lambda i, k: (0, 0)),     # w2^T (bf16)
                pl.BlockSpec(memory_space=pltpu.MemorySpace.SMEM),    # b2 scalar
            ],
            out_specs=pl.BlockSpec((1, tb), lambda i, k: (0, i)),     # lane-dense row
            scratch_shapes=[pltpu.VMEM((tb, HIDDEN), jnp.float32)],   # fc1 accumulator
        ),
        compiler_params=pltpu.CompilerParams(
            dimension_semantics=("parallel", "arbitrary"),
            vmem_limit_bytes=vmem_limit,
        ),
    )(x, w1_bf, b1_2d, w2t_bf, b2_s)

    return out_row.reshape(B, OUT)


def init_params(key, input_dim):
    """Deterministic init mimicking PyTorch nn.Linear default:
    U(-1/sqrt(fan_in), 1/sqrt(fan_in)) for both weight and bias."""
    k1, k2, k3, k4 = jax.random.split(key, 4)
    bound1 = 1.0 / jnp.sqrt(jnp.float32(input_dim))
    w1 = jax.random.uniform(k1, (input_dim, HIDDEN), jnp.float32, -bound1, bound1)
    b1 = jax.random.uniform(k2, (1, HIDDEN), jnp.float32, -bound1, bound1)
    bound2 = 1.0 / jnp.sqrt(jnp.float32(HIDDEN))
    w2 = jax.random.uniform(k3, (HIDDEN, OUT), jnp.float32, -bound2, bound2)
    b2 = jax.random.uniform(k4, (1, OUT), jnp.float32, -bound2, bound2)
    return w1, b1, w2, b2


if __name__ == "__main__":
    key = jax.random.PRNGKey(0)
    kx, kp = jax.random.split(key)

    # Small shape consistent with the module (batch=8, input_dim=32).
    B, input_dim = 8, 32
    x = jax.random.normal(kx, (B, input_dim), jnp.float32)
    w1, b1, w2, b2 = init_params(kp, input_dim)

    out = jax.block_until_ready(ann_forward(x, w1, b1, w2, b2))
    ref = jax.nn.sigmoid(jnp.maximum(x @ w1 + b1, 0.0) @ w2 + b2)
    assert out.shape == (B, OUT)
    assert jnp.allclose(out, ref, atol=2e-2, rtol=2e-2)

    # Second check: ragged batch (partial last tile), multi-step parallel grid
    # and the K-split / ragged-K masking path (D = 640 -> two 512-wide K blocks).
    B2, D2 = 300, 640
    x2 = jax.random.normal(kx, (B2, D2), jnp.float32)
    w1b, b1b, w2b, b2b = init_params(kp, D2)
    out2 = jax.block_until_ready(ann_forward(x2, w1b, b1b, w2b, b2b))
    ref2 = jax.nn.sigmoid(jnp.maximum(x2 @ w1b + b1b, 0.0) @ w2b + b2b)
    assert out2.shape == (B2, OUT)
    assert jnp.allclose(out2, ref2, atol=2e-2, rtol=2e-2)

    print("KERNEL_OK")
</pallas_src>

<mosaic_0001>
module attributes {stable_mosaic.version = 11 : i64} {
  func.func @ann_kernel(%arg0: i32, %arg1: i32, %arg2: memref<128x32xf32, #tpu.memory_space<vmem>>, %arg3: memref<32x128xbf16, #tpu.memory_space<vmem>>, %arg4: memref<1x128xf32, #tpu.memory_space<vmem>>, %arg5: memref<1x128xbf16, #tpu.memory_space<vmem>>, %arg6: memref<1xf32, #tpu.memory_space<smem>>, %arg7: memref<1x128xf32, #tpu.memory_space<vmem>>, %arg8: memref<128x128xf32, #tpu.memory_space<vmem>>) attributes {dimension_semantics = [#tpu.dimension_semantics<parallel>, #tpu.dimension_semantics<arbitrary>], iteration_bounds = array<i64: 1, 1>, scalar_prefetch = 0 : i64, scratch_operands = 1 : i64, tpu.core_type = #tpu.core_type<tc>, window_params = [{transform_indices = @transform_0, window_bounds = array<i64: 128, 32>}, {transform_indices = @transform_1, window_bounds = array<i64: 32, 128>}, {pipeline_mode = #tpu.pipeline_mode<synchronous>, transform_indices = @transform_2, window_bounds = array<i64: 1, 128>}, {pipeline_mode = #tpu.pipeline_mode<synchronous>, transform_indices = @transform_3, window_bounds = array<i64: 1, 128>}, {transform_indices = @transform_4, window_bounds = array<i64: 1>}, {transform_indices = @transform_5, window_bounds = array<i64: 1, 128>}]} {
    %c0_i32 = arith.constant 0 : i32
    %0 = arith.cmpi eq, %arg1, %c0_i32 : i32
    %1 = arith.extui %0 : i1 to i32
    %c0_i32_0 = arith.constant 0 : i32
    %2 = arith.cmpi ne, %1, %c0_i32_0 : i32
    scf.if %2 {
      %cst_10 = arith.constant 0.000000e+00 : f32
      %13 = vector.broadcast %cst_10 : f32 to vector<128x128xf32>
      %c0_11 = arith.constant 0 : index
      %c0_12 = arith.constant 0 : index
      %14 = vector.load %arg8[%c0_11, %c0_12] : memref<128x128xf32, #tpu.memory_space<vmem>>, vector<128x128xf32>
      tpu.vector_store %arg8[%c0_11, %c0_12], %13 {strides = array<i32>} : memref<128x128xf32, #tpu.memory_space<vmem>>, vector<128x128xf32>,
    } else {
    }
    %c0 = arith.constant 0 : index
    %c0_1 = arith.constant 0 : index
    %3 = vector.load %arg2[%c0, %c0_1] : memref<128x32xf32, #tpu.memory_space<vmem>>, vector<128x32xf32>
    %c0_2 = arith.constant 0 : index
    %c0_3 = arith.constant 0 : index
    %4 = vector.load %arg3[%c0_2, %c0_3] : memref<32x128xbf16, #tpu.memory_space<vmem>>, vector<32x128xbf16>
    %c0_4 = arith.constant 0 : index
    %c0_5 = arith.constant 0 : index
    %5 = vector.load %arg8[%c0_4, %c0_5] : memref<128x128xf32, #tpu.memory_space<vmem>>, vector<128x128xf32>
    %6 = arith.truncf %3 : vector<128x32xf32> to vector<128x32xbf16>
    %cst = arith.constant dense<0.000000e+00> : vector<128x128xf32>
    %7 = tpu.matmul %6, %4, %cst {dimension_numbers = #tpu.dot_dimension_numbers<[1], [0], [0], [1], [0, 0, 1, 1], [], []>} : vector<128x32xbf16>, vector<32x128xbf16>, vector<128x128xf32> -> vector<128x128xf32>
    %8 = arith.addf %5, %7 : vector<128x128xf32>
    %c0_6 = arith.constant 0 : index
    %c0_7 = arith.constant 0 : index
    %9 = vector.load %arg8[%c0_6, %c0_7] : memref<128x128xf32, #tpu.memory_space<vmem>>, vector<128x128xf32>
    tpu.vector_store %arg8[%c0_6, %c0_7], %8 {strides = array<i32>} : memref<128x128xf32, #tpu.memory_space<vmem>>, vector<128x128xf32>,
    %c0_i32_8 = arith.constant 0 : i32
    %10 = arith.cmpi eq, %arg1, %c0_i32_8 : i32
    %11 = arith.extui %10 : i1 to i32
    %c0_i32_9 = arith.constant 0 : i32
    %12 = arith.cmpi ne, %11, %c0_i32_9 : i32
    scf.if %12 {
      %c0_10 = arith.constant 0 : index
      %c0_11 = arith.constant 0 : index
      %13 = vector.load %arg8[%c0_10, %c0_11] : memref<128x128xf32, #tpu.memory_space<vmem>>, vector<128x128xf32>
      %c0_12 = arith.constant 0 : index
      %c0_13 = arith.constant 0 : index
      %14 = vector.load %arg4[%c0_12, %c0_13] : memref<1x128xf32, #tpu.memory_space<vmem>>, vector<1x128xf32>
      %15 = vector.broadcast %14 : vector<1x128xf32> to vector<128x128xf32>
      %16 = arith.addf %13, %15 : vector<128x128xf32>
      %cst_14 = arith.constant 0.000000e+00 : f32
      %17 = vector.broadcast %cst_14 : f32 to vector<128x128xf32>
      %18 = arith.maximumf %16, %17 : vector<128x128xf32>
      %19 = arith.truncf %18 : vector<128x128xf32> to vector<128x128xbf16>
      %c0_15 = arith.constant 0 : index
      %c0_16 = arith.constant 0 : index
      %20 = vector.load %arg5[%c0_15, %c0_16] : memref<1x128xbf16, #tpu.memory_space<vmem>>, vector<1x128xbf16>
      %cst_17 = arith.constant dense<0.000000e+00> : vector<1x128xf32>
      %21 = tpu.matmul %20, %19, %cst_17 {dimension_numbers = #tpu.dot_dimension_numbers<[1], [1], [0], [0], [0, 0, 1, 0], [], []>} : vector<1x128xbf16>, vector<128x128xbf16>, vector<1x128xf32> -> vector<1x128xf32>
      %c0_18 = arith.constant 0 : index
      %22 = memref.load %arg6[%c0_18] : memref<1xf32, #tpu.memory_space<smem>>
      %23 = vector.broadcast %22 : f32 to vector<1x128xf32>
      %24 = arith.addf %21, %23 : vector<1x128xf32>
      %cst_19 = arith.constant 0.000000e+00 : f32
      %25 = vector.broadcast %cst_19 : f32 to vector<1x128xf32>
      %26 = arith.subf %25, %24 : vector<1x128xf32>
      %27 = math.exp %26 : vector<1x128xf32>
      %cst_20 = arith.constant 1.000000e+00 : f32
      %28 = vector.broadcast %cst_20 : f32 to vector<1x128xf32>
      %29 = arith.addf %28, %27 : vector<1x128xf32>
      %30 = tpu.reciprocal %29 {approx = true} : vector<1x128xf32> -> vector<1x128xf32>
      %c0_21 = arith.constant 0 : index
      %c0_22 = arith.constant 0 : index
      %31 = vector.load %arg7[%c0_21, %c0_22] : memref<1x128xf32, #tpu.memory_space<vmem>>, vector<1x128xf32>
      tpu.vector_store %arg7[%c0_21, %c0_22], %30 {strides = array<i32>} : memref<1x128xf32, #tpu.memory_space<vmem>>, vector<1x128xf32>,
    } else {
    }
    return
  }
  func.func @transform_0(%arg0: i32, %arg1: i32) -> (i32, i32) {
    %c0_i32 = arith.constant 0 : i32
    return %arg0, %arg1 : i32, i32
  }
  func.func @transform_1(%arg0: i32, %arg1: i32) -> (i32, i32) {
    %c0_i32 = arith.constant 0 : i32
    %c0_i32_0 = arith.constant 0 : i32
    return %arg1, %c0_i32 : i32, i32
  }
  func.func @transform_2(%arg0: i32, %arg1: i32) -> (i32, i32) {
    %c0_i32 = arith.constant 0 : i32
    %c0_i32_0 = arith.constant 0 : i32
    %c0_i32_1 = arith.constant 0 : i32
    return %c0_i32, %c0_i32_0 : i32, i32
  }
  func.func @transform_3(%arg0: i32, %arg1: i32) -> (i32, i32) {
    %c0_i32 = arith.constant 0 : i32
    %c0_i32_0 = arith.constant 0 : i32
    %c0_i32_1 = arith.constant 0 : i32
    return %c0_i32, %c0_i32_0 : i32, i32
  }
  func.func @transform_4(%arg0: i32, %arg1: i32) -> i32 {
    %c0_i32 = arith.constant 0 : i32
    %c0_i32_0 = arith.constant 0 : i32
    return %c0_i32 : i32
  }
  func.func @transform_5(%arg0: i32, %arg1: i32) -> (i32, i32) {
    %c0_i32 = arith.constant 0 : i32
    %c0_i32_0 = arith.constant 0 : i32
    return %c0_i32, %arg0 : i32, i32
  }
}

</mosaic_0001>

<llo_original>
// kernel: ann_forward.1
$region0: #{ann_forward.1}
  #allocation0 [shape = 'u32[]', space=smem, size = 0x4, offset = 0x4, fixed_abs, tag = 'smem constant byte address 0x4 - core index']
  #allocation1 [shape = 'u32[144,128]{1,0:T(1,128)}', space=vmem, size = 0x12000, scoped, tag = 'internal scratch']
  #allocation2 [shape = 'f32[128,128]{1,0:T(8,128)}', space=vmem, size = 0x10000, scoped, tag = 'scratch operand']
  #allocation3 [shape = 'f32[1]{0:T(128)S(6)}', space=smem, size = 0x200, scoped, tag = 'scoped memory for ann_forward.1']
  %s0 = inlined_call_operand.vmem [shape: f32[8,32], index: 0, kind: input, shape index: {}]
  %s1 = inlined_call_operand.vmem [shape: bf16[32,128], index: 1, kind: input, shape index: {}]
  %s2 = inlined_call_operand.vmem [shape: f32[1,128], index: 2, kind: input, shape index: {}]
  %s3 = inlined_call_operand.vmem [shape: bf16[1,128], index: 3, kind: input, shape index: {}]
  %s4 = inlined_call_operand.<no memory space> [shape: f32[1], index: 4, kind: input, shape index: {}]
  %s5 = inlined_call_operand.hbm [shape: f32[1,8], index: 5, kind: output, shape index: {}]
  %s6 = sld [smem:[#allocation0]]
  $region38: #{ann_forward.1} parent=0
    _
  %s8 = ssub.s32 1, %s6
  %s9 = scalar_select 0, %s8, %s6
  %10 = sst [smem:[#allocation3]] %s4
  $region1: #{ann_forward.1} parent=0
    #allocation4 [shape = 'u8[512]{0}', space=vmem, size = 0x400, scoped, tag = 'output window, operand 0, single buffered']
    #allocation5 [shape = 's32[1]{0}', space=sflag, size = 0x4, scoped, tag = 'scoped memory for ann_forward.1']
    %11 = vsyncpa [#allocation5], 0
    // Predicated region
    $region2: #{ann_forward.1} parent=1 // pred_check
      _
    $region3: #{ann_forward.1} parent=1 // pred_check_branch
      %13 = sbr.rel (0) target = $region5
    $region4: #{ann_forward.1} parent=1 // pred_region
      _
    $region5: #{ann_forward.1} parent=1 // pred_fallthru
      _
    // Predicated region
    $region6: #{ann_forward.1} parent=1 // pred_check
      _
    $region7: #{ann_forward.1} parent=1 // pred_check_branch
      %15 = sbr.rel (0) target = $region9
    $region8: #{ann_forward.1} parent=1 // pred_region
      _
    $region9: #{ann_forward.1} parent=1 // pred_fallthru
      _
    // Predicated region
    $region10: #{ann_forward.1} parent=1 // pred_check
      _
    $region11: #{ann_forward.1} parent=1 // pred_check_branch
      %17 = sbr.rel (0) target = $region13
    $region12: #{ann_forward.1} parent=1 // pred_region
      _
    $region13: #{ann_forward.1} parent=1 // pred_fallthru
      _
    // Predicated region
    $region14: #{ann_forward.1} parent=1 // pred_check
      _
    $region15: #{ann_forward.1} parent=1 // pred_check_branch
      %19 = sbr.rel (0) target = $region17
    $region16: #{ann_forward.1} parent=1 // pred_region
      _
    $region17: #{ann_forward.1} parent=1 // pred_fallthru
      _
    // Predicated region
    $region18: #{ann_forward.1} parent=1 // pred_check
      _
    $region19: #{ann_forward.1} parent=1 // pred_check_branch
      %21 = sbr.rel (0) target = $region21
    $region20: #{ann_forward.1} parent=1 // pred_region
      _
    $region21: #{ann_forward.1} parent=1 // pred_fallthru
      _
    %p23 = scmp.eq.s32.totalorder 0, 0
    // Predicated region
    $region22: #{ann_forward.1} parent=1 // pred_check
      %p24 = pneg %p23
    $region23: #{ann_forward.1} parent=1 // pred_check_branch
      %26 = sbr.rel (%p24) target = $region25
    $region24: #{ann_forward.1} parent=1 // pred_region
      %27 = vst [vmem:[#allocation2] sm:$0xff] 0.0
      %28 = vst [vmem:[#allocation2 + $0x8] sm:$0xff] 0.0
      %29 = vst [vmem:[#allocation2 + $0x10] sm:$0xff] 0.0
      %30 = vst [vmem:[#allocation2 + $0x18] sm:$0xff] 0.0
      %31 = vst [vmem:[#allocation2 + $0x20] sm:$0xff] 0.0
      %32 = vst [vmem:[#allocation2 + $0x28] sm:$0xff] 0.0
      %33 = vst [vmem:[#allocation2 + $0x30] sm:$0xff] 0.0
      %34 = vst [vmem:[#allocation2 + $0x38] sm:$0xff] 0.0
      %35 = vst [vmem:[#allocation2 + $0x40] sm:$0xff] 0.0
      %36 = vst [vmem:[#allocation2 + $0x48] sm:$0xff] 0.0
      %37 = vst [vmem:[#allocation2 + $0x50] sm:$0xff] 0.0
      %38 = vst [vmem:[#allocation2 + $0x58] sm:$0xff] 0.0
      %39 = vst [vmem:[#allocation2 + $0x60] sm:$0xff] 0.0
      %40 = vst [vmem:[#allocation2 + $0x68] sm:$0xff] 0.0
      %41 = vst [vmem:[#allocation2 + $0x70] sm:$0xff] 0.0
      %42 = vst [vmem:[#allocation2 + $0x78] sm:$0xff] 0.0
    $region25: #{ann_forward.1} parent=1 // pred_fallthru
      _
    %v43 = vld [vmem:[%s0] sm:$0xff]
    %v44 = vld [vmem:[%s0 + $0x8] sm:$0xff]
    %v45 = vld [vmem:[%s0 + $0x10] sm:$0xff]
    %v46 = vld [vmem:[%s0 + $0x18] sm:$0xff]
    %v47 = vld [vmem:[%s0 + $0x20] sm:$0xff]
    %v48 = vld [vmem:[%s0 + $0x28] sm:$0xff]
    %v49 = vld [vmem:[%s0 + $0x30] sm:$0xff]
    %v50 = vld [vmem:[%s0 + $0x38] sm:$0xff]
    %v51 = vld [vmem:[%s0 + $0x40] sm:$0xff]
    %v52 = vld [vmem:[%s0 + $0x48] sm:$0xff]
    %v53 = vld [vmem:[%s0 + $0x50] sm:$0xff]
    %v54 = vld [vmem:[%s0 + $0x58] sm:$0xff]
    %v55 = vld [vmem:[%s0 + $0x60] sm:$0xff]
    %v56 = vld [vmem:[%s0 + $0x68] sm:$0xff]
    %v57 = vld [vmem:[%s0 + $0x70] sm:$0xff]
    %v58 = vld [vmem:[%s0 + $0x78] sm:$0xff]
    %v59 = vld [vmem:[%s1] sm:$0xf]
    %v60 = vld [vmem:[%s1 + $0x4] sm:$0xf]
    %v61 = vld [vmem:[%s1 + $0x8] sm:$0xf]
    %v62 = vld [vmem:[%s1 + $0xc] sm:$0xf]
    %v63 = vld [vmem:[#allocation2] sm:$0xff]
    %v64 = vld [vmem:[#allocation2 + $0x8] sm:$0xff]
    %v65 = vld [vmem:[#allocation2 + $0x10] sm:$0xff]
    %v66 = vld [vmem:[#allocation2 + $0x18] sm:$0xff]
    %v67 = vld [vmem:[#allocation2 + $0x20] sm:$0xff]
    %v68 = vld [vmem:[#allocation2 + $0x28] sm:$0xff]
    %v69 = vld [vmem:[#allocation2 + $0x30] sm:$0xff]
    %v70 = vld [vmem:[#allocation2 + $0x38] sm:$0xff]
    %v71 = vld [vmem:[#allocation2 + $0x40] sm:$0xff]
    %v72 = vld [vmem:[#allocation2 + $0x48] sm:$0xff]
    %v73 = vld [vmem:[#allocation2 + $0x50] sm:$0xff]
    %v74 = vld [vmem:[#allocation2 + $0x58] sm:$0xff]
    %v75 = vld [vmem:[#allocation2 + $0x60] sm:$0xff]
    %v76 = vld [vmem:[#allocation2 + $0x68] sm:$0xff]
    %v77 = vld [vmem:[#allocation2 + $0x70] sm:$0xff]
    %v78 = vld [vmem:[#allocation2 + $0x78] sm:$0xff]
    %v79 = vpack.c.bf16 %v44, %v43
    %v80 = vpack.c.bf16 %v46, %v45
    %v81 = vpack.c.bf16 %v48, %v47
    %v82 = vpack.c.bf16 %v50, %v49
    %v83 = vpack.c.bf16 %v52, %v51
    %v84 = vpack.c.bf16 %v54, %v53
    %v85 = vpack.c.bf16 %v56, %v55
    %v86 = vpack.c.bf16 %v58, %v57
    %v91 = vunpack.c.l.b16 %v59
    %v92 = vunpack.c.l.b16 %v60
    %v93 = vunpack.c.l.b16 %v61
    %v94 = vunpack.c.l.b16 %v62
    %v95 = vpack.c.b16 %v92, %v91
    %v96 = vpack.c.b16 %v94, %v93
    %vm99 = vcmask 261120
    %v101 = vsel %vm99, %v79, 0
    %v104 = vsel %vm99, %v80, 0
    %v107 = vsel %vm99, %v81, 0
    %v110 = vsel %vm99, %v82, 0
    %v113 = vsel %vm99, %v83, 0
    %v116 = vsel %vm99, %v84, 0
    %v119 = vsel %vm99, %v85, 0
    %v122 = vsel %vm99, %v86, 0
    %124 = vmatprep.subr.bf16.mxu0 0
    %125 = vmatpush1.bf16.msra.mxu0 0
    %126 = vmatprep.subr.bf16.mxu0 0
    %127 = vmatpush1.bf16.msra.mxu0 0
    %128 = vmatprep.subr.bf16.mxu0 0
    %129 = vmatpush1.bf16.msra.mxu0 0
    %130 = vmatprep.subr.bf16.mxu0 0
    %131 = vmatpush1.bf16.msra.mxu0 0
    %132 = vmatprep.subr.bf16.mxu0 0
    %133 = vmatpush1.bf16.msra.mxu0 0
    %134 = vmatprep.subr.bf16.mxu0 0
    %135 = vmatpush1.bf16.msra.mxu0 0
    %136 = vmatprep.subr.bf16.mxu0 0
    %137 = vmatpush1.bf16.msra.mxu0 %v96
    %138 = vmatprep.subr.bf16.mxu0 0
    %139 = vmatpush1.bf16.msra.mxu0 %v95
    %140 = vmatprep.subr.bf16.mxu0 0
    %141 = vmatpush2.bf16.msra.mxu0 0
    %142 = vmatprep.subr.bf16.mxu0 0
    %143 = vmatpush2.bf16.msra.mxu0 0
    %144 = vmatprep.subr.bf16.mxu0 0
    %145 = vmatpush2.bf16.msra.mxu0 0
    %146 = vmatprep.subr.bf16.mxu0 0
    %147 = vmatpush2.bf16.msra.mxu0 0
    %148 = vmatprep.subr.bf16.mxu0 0
    %149 = vmatpush2.bf16.msra.mxu0 0
    %150 = vmatprep.subr.bf16.mxu0 0
    %151 = vmatpush2.bf16.msra.mxu0 0
    %152 = vmatprep.subr.bf16.mxu0 0
    %153 = vmatpush2.bf16.msra.mxu0 0
    %154 = vmatprep.subr.bf16.mxu0 0
    %155 = vmatpush2.bf16.msra.mxu0 0
    %156 = vmatprep.mubr.bf16.mxu0 0
    %157 = vmatmul.mubr.bf16.gmra.mxu0 %v101
    %v158 = vpop.f32.mrf.mxu0
    %v159 = vadd.f32 0.0, %v158
    %v160 = vpop.f32.mrf.mxu0
    %v161 = vpop.f32.mrf.mxu0
    %v162 = vadd.f32 0.0, %v161
    %v163 = vpop.f32.mrf.mxu0
    %164 = vmatprep.mubr.bf16.mxu0 0
    %165 = vmatmul.mubr.bf16.gmra.mxu0 %v104
    %v166 = vpop.f32.mrf.mxu0
    %v167 = vadd.f32 0.0, %v166
    %v168 = vpop.f32.mrf.mxu0
    %v169 = vpop.f32.mrf.mxu0
    %v170 = vadd.f32 0.0, %v169
    %v171 = vpop.f32.mrf.mxu0
    %172 = vmatprep.mubr.bf16.mxu0 0
    %173 = vmatmul.mubr.bf16.gmra.mxu0 %v107
    %v174 = vpop.f32.mrf.mxu0
    %v175 = vadd.f32 0.0, %v174
    %v176 = vpop.f32.mrf.mxu0
    %v177 = vpop.f32.mrf.mxu0
    %v178 = vadd.f32 0.0, %v177
    %v179 = vpop.f32.mrf.mxu0
    %180 = vmatprep.mubr.bf16.mxu0 0
    %181 = vmatmul.mubr.bf16.gmra.mxu0 %v110
    %v182 = vpop.f32.mrf.mxu0
    %v183 = vadd.f32 0.0, %v182
    %v184 = vpop.f32.mrf.mxu0
    %v185 = vpop.f32.mrf.mxu0
    %v186 = vadd.f32 0.0, %v185
    %v187 = vpop.f32.mrf.mxu0
    %188 = vmatprep.mubr.bf16.mxu0 0
    %189 = vmatmul.mubr.bf16.gmra.mxu0 %v113
    %v190 = vpop.f32.mrf.mxu0
    %v191 = vadd.f32 0.0, %v190
    %v192 = vpop.f32.mrf.mxu0
    %v193 = vpop.f32.mrf.mxu0
    %v194 = vadd.f32 0.0, %v193
    %v195 = vpop.f32.mrf.mxu0
    %196 = vmatprep.mubr.bf16.mxu0 0
    %197 = vmatmul.mubr.bf16.gmra.mxu0 %v116
    %v198 = vpop.f32.mrf.mxu0
    %v199 = vadd.f32 0.0, %v198
    %v200 = vpop.f32.mrf.mxu0
    %v201 = vpop.f32.mrf.mxu0
    %v202 = vadd.f32 0.0, %v201
    %v203 = vpop.f32.mrf.mxu0
    %204 = vmatprep.mubr.bf16.mxu0 0
    %205 = vmatmul.mubr.bf16.gmra.mxu0 %v119
    %v206 = vpop.f32.mrf.mxu0
    %v207 = vadd.f32 0.0, %v206
    %v208 = vpop.f32.mrf.mxu0
    %v209 = vpop.f32.mrf.mxu0
    %v210 = vadd.f32 0.0, %v209
    %v211 = vpop.f32.mrf.mxu0
    %212 = vmatprep.mubr.bf16.mxu0 0
    %213 = vmatmul.mubr.bf16.gmra.mxu0 %v122
    %v214 = vpop.f32.mrf.mxu0
    %v215 = vadd.f32 0.0, %v214
    %v216 = vpop.f32.mrf.mxu0
    %v217 = vpop.f32.mrf.mxu0
    %v218 = vadd.f32 0.0, %v217
    %v219 = vpop.f32.mrf.mxu0
    %220 = vdwg.mxu0
    %v221 = vadd.f32 %v63, %v159
    %v222 = vadd.f32 %v64, %v162
    %v223 = vadd.f32 %v65, %v167
    %v224 = vadd.f32 %v66, %v170
    %v225 = vadd.f32 %v67, %v175
    %v226 = vadd.f32 %v68, %v178
    %v227 = vadd.f32 %v69, %v183
    %v228 = vadd.f32 %v70, %v186
    %v229 = vadd.f32 %v71, %v191
    %v230 = vadd.f32 %v72, %v194
    %v231 = vadd.f32 %v73, %v199
    %v232 = vadd.f32 %v74, %v202
    %v233 = vadd.f32 %v75, %v207
    %v234 = vadd.f32 %v76, %v210
    %v235 = vadd.f32 %v77, %v215
    %v236 = vadd.f32 %v78, %v218
    %237 = vst [vmem:[#allocation2] sm:$0xff] %v221
    %238 = vst [vmem:[#allocation2 + $0x8] sm:$0xff] %v222
    %239 = vst [vmem:[#allocation2 + $0x10] sm:$0xff] %v223
    %240 = vst [vmem:[#allocation2 + $0x18] sm:$0xff] %v224
    %241 = vst [vmem:[#allocation2 + $0x20] sm:$0xff] %v225
    %242 = vst [vmem:[#allocation2 + $0x28] sm:$0xff] %v226
    %243 = vst [vmem:[#allocation2 + $0x30] sm:$0xff] %v227
    %244 = vst [vmem:[#allocation2 + $0x38] sm:$0xff] %v228
    %245 = vst [vmem:[#allocation2 + $0x40] sm:$0xff] %v229
    %246 = vst [vmem:[#allocation2 + $0x48] sm:$0xff] %v230
    %247 = vst [vmem:[#allocation2 + $0x50] sm:$0xff] %v231
    %248 = vst [vmem:[#allocation2 + $0x58] sm:$0xff] %v232
    %249 = vst [vmem:[#allocation2 + $0x60] sm:$0xff] %v233
    %250 = vst [vmem:[#allocation2 + $0x68] sm:$0xff] %v234
    %251 = vst [vmem:[#allocation2 + $0x70] sm:$0xff] %v235
    %252 = vst [vmem:[#allocation2 + $0x78] sm:$0xff] %v236
    // Predicated region
    $region26: #{ann_forward.1} parent=1 // pred_check
      %p253 = pneg %p23
    $region27: #{ann_forward.1} parent=1 // pred_check_branch
      %255 = sbr.rel (%p253) target = $region29
    $region28: #{ann_forward.1} parent=1 // pred_region
      %v256 = vld [vmem:[#allocation2] sm:$0xff]
      %v257 = vld [vmem:[#allocation2 + $0x8] sm:$0xff]
      %v258 = vld [vmem:[#allocation2 + $0x10] sm:$0xff]
      %v259 = vld [vmem:[#allocation2 + $0x18] sm:$0xff]
      %v260 = vld [vmem:[#allocation2 + $0x20] sm:$0xff]
      %v261 = vld [vmem:[#allocation2 + $0x28] sm:$0xff]
      %v262 = vld [vmem:[#allocation2 + $0x30] sm:$0xff]
      %v263 = vld [vmem:[#allocation2 + $0x38] sm:$0xff]
      %v264 = vld [vmem:[#allocation2 + $0x40] sm:$0xff]
      %v265 = vld [vmem:[#allocation2 + $0x48] sm:$0xff]
      %v266 = vld [vmem:[#allocation2 + $0x50] sm:$0xff]
      %v267 = vld [vmem:[#allocation2 + $0x58] sm:$0xff]
      %v268 = vld [vmem:[#allocation2 + $0x60] sm:$0xff]
      %v269 = vld [vmem:[#allocation2 + $0x68] sm:$0xff]
      %v270 = vld [vmem:[#allocation2 + $0x70] sm:$0xff]
      %v271 = vld [vmem:[#allocation2 + $0x78] sm:$0xff]
      %v272 = vld [vmem:[%s2] sm:$0x1]
      %v274 = vlaneseq
      %v275 = vshrl.u32 %v274, 7
      %v276 = vsub.s32 0, %v275
      %v277 = vrot.slane %v272, %v276
      %v279 = vadd.f32 %v256, %v277
      %v280 = vadd.f32 %v257, %v277
      %v281 = vadd.f32 %v258, %v277
      %v282 = vadd.f32 %v259, %v277
      %v283 = vadd.f32 %v260, %v277
      %v284 = vadd.f32 %v261, %v277
      %v285 = vadd.f32 %v262, %v277
      %v286 = vadd.f32 %v263, %v277
      %v287 = vadd.f32 %v264, %v277
      %v288 = vadd.f32 %v265, %v277
      %v289 = vadd.f32 %v266, %v277
      %v290 = vadd.f32 %v267, %v277
      %v291 = vadd.f32 %v268, %v277
      %v292 = vadd.f32 %v269, %v277
      %v293 = vadd.f32 %v270, %v277
      %v294 = vadd.f32 %v271, %v277
      %v295 = vmax.f32 %v279, 0.0
      %v296 = vmax.f32 %v280, 0.0
      %v297 = vmax.f32 %v281, 0.0
      %v298 = vmax.f32 %v282, 0.0
      %v299 = vmax.f32 %v283, 0.0
      %v300 = vmax.f32 %v284, 0.0
      %v301 = vmax.f32 %v285, 0.0
      %v302 = vmax.f32 %v286, 0.0
      %v303 = vmax.f32 %v287, 0.0
      %v304 = vmax.f32 %v288, 0.0
      %v305 = vmax.f32 %v289, 0.0
      %v306 = vmax.f32 %v290, 0.0
      %v307 = vmax.f32 %v291, 0.0
      %v308 = vmax.f32 %v292, 0.0
      %v309 = vmax.f32 %v293, 0.0
      %v310 = vmax.f32 %v294, 0.0
      %v311 = vpack.c.bf16 %v296, %v295
      %v312 = vpack.c.bf16 %v298, %v297
      %v313 = vpack.c.bf16 %v300, %v299
      %v314 = vpack.c.bf16 %v302, %v301
      %v315 = vpack.c.bf16 %v304, %v303
      %v316 = vpack.c.bf16 %v306, %v305
      %v317 = vpack.c.bf16 %v308, %v307
      %v318 = vpack.c.bf16 %v310, %v309
      %v319 = vld [vmem:[%s3] sm:$0x1]
      %s320 = sld [smem:[#allocation3]]
      %v321 = vstv %s320
      %322 = vmatprep.subr.bf16.mxu0 0
      %323 = vmatpush1.bf16.xpose.msra.mxu0 %v318
      %324 = vmatprep.subr.bf16.mxu0 0
      %325 = vmatpush1.bf16.xpose.msra.mxu0 %v317
      %326 = vmatprep.subr.bf16.mxu0 0
      %327 = vmatpush1.bf16.xpose.msra.mxu0 %v316
      %328 = vmatprep.subr.bf16.mxu0 0
      %329 = vmatpush1.bf16.xpose.msra.mxu0 %v315
      %330 = vmatprep.subr.bf16.mxu0 0
      %331 = vmatpush1.bf16.xpose.msra.mxu0 %v314
      %332 = vmatprep.subr.bf16.mxu0 0
      %333 = vmatpush1.bf16.xpose.msra.mxu0 %v313
      %334 = vmatprep.subr.bf16.mxu0 0
      %335 = vmatpush1.bf16.xpose.msra.mxu0 %v312
      %336 = vmatprep.subr.bf16.mxu0 0
      %337 = vmatpush1.bf16.xpose.msra.mxu0 %v311
      %338 = vmatprep.subr.bf16.mxu0 0
      %339 = vmatpush2.bf16.xpose.msra.mxu0 0
      %340 = vmatprep.subr.bf16.mxu0 0
      %341 = vmatpush2.bf16.xpose.msra.mxu0 0
      %342 = vmatprep.subr.bf16.mxu0 0
      %343 = vmatpush2.bf16.xpose.msra.mxu0 0
      %344 = vmatprep.subr.bf16.mxu0 0
      %345 = vmatpush2.bf16.xpose.msra.mxu0 0
      %346 = vmatprep.subr.bf16.mxu0 0
      %347 = vmatpush2.bf16.xpose.msra.mxu0 0
      %348 = vmatprep.subr.bf16.mxu0 0
      %349 = vmatpush2.bf16.xpose.msra.mxu0 0
      %350 = vmatprep.subr.bf16.mxu0 0
      %351 = vmatpush2.bf16.xpose.msra.mxu0 0
      %352 = vmatprep.subr.bf16.mxu0 0
      %353 = vmatpush2.bf16.xpose.msra.mxu0 0
      %354 = vmatprep.mubr.bf16.mxu0 0
      %355 = vmatmul.mubr.bf16.gmra.mxu0 %v319
      %v356 = vpop.f32.mrf.mxu0
      %v357 = vadd.f32 %v321, %v356
      %v358 = vpop.f32.mrf.mxu0
      %v359 = vpop.f32.mrf.mxu0
      %v360 = vpop.f32.mrf.mxu0
      %361 = vdwg.mxu0
      %v362 = vsub.f32 0.0, %v357
      %v363 = vmul.f32 %v362, 1.442695
      %v364 = vpow.pop %v363
      %v365 = vadd.f32 %v364, 1.0
      %v366 = vrcp.pop %v365
      %367 = vst [vmem:[#allocation4] sm:$0x1] %v366
    $region29: #{ann_forward.1} parent=1 // pred_fallthru
      _
    // Predicated region
    $region30: #{ann_forward.1} parent=1 // pred_check
      _
    $region31: #{ann_forward.1} parent=1 // pred_check_branch
      %369 = sbr.rel (0) target = $region33
    $region32: #{ann_forward.1} parent=1 // pred_region
      %s371 = ssub.s32 16, 16
      %372 = vsyncadd [#allocation5], %s371
      %s374 = sshll.u32 [#allocation4], 4
      %s375 = int_to_ptr.vmem [resolvable:$true] %s374
      %377 = dma.vmem_to_hbm [thread:$0]  %s375, 16, %s5, [#allocation5]
    $region33: #{ann_forward.1} parent=1 // pred_fallthru
      _
    // Predicated region
    $region34: #{ann_forward.1} parent=1 // pred_check
      _
    $region35: #{ann_forward.1} parent=1 // pred_check_branch
      %379 = sbr.rel (0) target = $region37
    $region36: #{ann_forward.1} parent=1 // pred_region
      %380 = dma.done [#allocation5], 16
    $region37: #{ann_forward.1} parent=1 // pred_fallthru
      _
    %381 = vsyncpa [#allocation5], 1

</llo_original>
